<compile_context>
chip_gen: v7x
topology: tpu7x:2x2x1
jax: 0.10.0
libtpu: 0.0.40
codegen_flags: <defaults>
</compile_context>

<pallas_src>
import functools

import jax
import jax.numpy as jnp
import numpy as np
from jax.experimental import pallas as pl
from jax.experimental.pallas import tpu as pltpu


# ---------------------------------------------------------------------------
# Fused Pallas kernel: conv (matmul) + batch stats + BN + LeakyReLU
# ---------------------------------------------------------------------------
def _fused_kernel(w_ref, p_ref, g_ref, b_ref, o_ref,
                  y_sc, sum_sc, sq_sc, scale_sc, shift_sc,
                  *, inv_m, tm, eps, neg_slope):
    phase = pl.program_id(0)      # 0: conv + stats, 1: normalize + activation
    m = pl.program_id(1)          # M-tile index
    off = pl.multiple_of(m * tm, tm)

    @pl.when(jnp.logical_and(phase == 0, m == 0))
    def _():
        sum_sc[...] = jnp.zeros_like(sum_sc)
        sq_sc[...] = jnp.zeros_like(sq_sc)

    @pl.when(phase == 0)
    def _():
        # [N, tm] = [N, K] @ [K, tm], bf16 operands, f32 accumulation.
        y = jnp.dot(w_ref[...], p_ref[...], preferred_element_type=jnp.float32)
        y_sc[:, pl.ds(off, tm)] = y
        sum_sc[...] += jnp.sum(y, axis=1, keepdims=True)
        sq_sc[...] += jnp.sum(y * y, axis=1, keepdims=True)

    # Phase boundary: fold BatchNorm (biased batch stats) into scale/shift.
    @pl.when(jnp.logical_and(phase == 1, m == 0))
    def _():
        mean = sum_sc[...] * inv_m
        var = jnp.maximum(sq_sc[...] * inv_m - mean * mean, 0.0)
        inv_std = jax.lax.rsqrt(var + eps)
        scale = g_ref[...] * inv_std
        scale_sc[...] = scale
        shift_sc[...] = b_ref[...] - mean * scale

    @pl.when(phase == 1)
    def _():
        z = y_sc[:, pl.ds(off, tm)] * scale_sc[...] + shift_sc[...]
        o_ref[...] = jnp.where(z >= 0.0, z, neg_slope * z)


def _pick_tm(m_pad, cap=4096):
    """Largest lane-dense M tile (multiple of 128) that divides m_pad."""
    if m_pad <= cap:
        return m_pad
    for t in range(cap, 127, -128):
        if m_pad % t == 0:
            return t
    return 128


def _fused_conv_bn_lrelu(w_mat, patches, gamma, beta, m_real,
                         eps=1e-5, neg_slope=0.01):
    """w_mat: [N_pad, K_pad] bf16, patches: [K_pad, M_pad] bf16 (lane-dense M),
    gamma/beta: [N_pad, 1] f32. Returns [N_pad, M_pad] f32."""
    n_pad, k_pad = w_mat.shape
    _, m_pad = patches.shape
    tm = _pick_tm(m_pad)
    mt = m_pad // tm
    last = mt - 1

    kernel = functools.partial(
        _fused_kernel, inv_m=1.0 / float(m_real), tm=tm,
        eps=float(eps), neg_slope=float(neg_slope))

    cost = pl.CostEstimate(
        flops=2 * n_pad * k_pad * m_pad + 8 * n_pad * m_pad,
        transcendentals=0,
        bytes_accessed=int(w_mat.size * 2 + patches.size * 2
                           + n_pad * m_pad * 4 + 4 * n_pad * 4))

    return pl.pallas_call(
        kernel,
        out_shape=jax.ShapeDtypeStruct((n_pad, m_pad), jnp.float32),
        grid_spec=pltpu.PrefetchScalarGridSpec(
            num_scalar_prefetch=0,
            grid=(2, mt),
            in_specs=[
                pl.BlockSpec((n_pad, k_pad), lambda p, i: (0, 0)),   # weights
                # phase 0: walk M tiles; phase 1: hold last tile (no re-fetch).
                pl.BlockSpec((k_pad, tm),
                             lambda p, i: (0, i * (1 - p) + last * p)),
                pl.BlockSpec((n_pad, 1), lambda p, i: (0, 0)),        # gamma
                pl.BlockSpec((n_pad, 1), lambda p, i: (0, 0)),        # beta
            ],
            # phase 0: park on block 0 (never written -> no garbage writeback);
            # phase 1: walk M tiles, emitting the final activations.
            out_specs=pl.BlockSpec((n_pad, tm), lambda p, i: (0, i * p)),
            scratch_shapes=[
                pltpu.VMEM((n_pad, m_pad), jnp.float32),   # conv result y
                pltpu.VMEM((n_pad, 1), jnp.float32),        # per-channel sum
                pltpu.VMEM((n_pad, 1), jnp.float32),        # per-channel sum sq
                pltpu.VMEM((n_pad, 1), jnp.float32),        # BN scale
                pltpu.VMEM((n_pad, 1), jnp.float32),        # BN shift
            ]),
        compiler_params=pltpu.CompilerParams(
            dimension_semantics=("arbitrary", "arbitrary")),
        cost_estimate=cost,
    )(w_mat, patches, gamma, beta)


# ---------------------------------------------------------------------------
# Host-side glue (im2col in [K, M] layout, padding) -- plain JAX
# ---------------------------------------------------------------------------
def _round_up(x, m):
    return (x + m - 1) // m * m


def _im2col_km(x_nchw, kh, kw, pad, stride):
    """Patches in [K, M] layout: K = kh*kw*C (feature order (ki, kj, c)),
    M = B*Hout*Wout on the last (lane) axis."""
    B, C, H, W = x_nchw.shape
    Hout = (H + 2 * pad - kh) // stride + 1
    Wout = (W + 2 * pad - kw) // stride + 1
    xp = jnp.pad(x_nchw, ((0, 0), (0, 0), (pad, pad), (pad, pad)))
    taps = []
    for i in range(kh):
        for j in range(kw):
            taps.append(xp[:, :, i:i + stride * Hout:stride,
                              j:j + stride * Wout:stride])   # [B, C, Hout, Wout]
    pat = jnp.stack(taps, axis=0)                  # [kh*kw, B, C, Hout, Wout]
    pat = jnp.transpose(pat, (0, 2, 1, 3, 4))      # [kh*kw, C, B, Hout, Wout]
    pat = pat.reshape(kh * kw * C, B * Hout * Wout)
    return pat, Hout, Wout


def conv_block_d_forward(x, params, downsample=False, eps=1e-5, neg_slope=0.01):
    """Pallas implementation of Conv_Block_D.forward (training-mode BN).
    x: NCHW float32."""
    w = params["conv_w"]                              # (outc, inc, kh, kw)
    gamma, beta = params["bn_gamma"], params["bn_beta"]
    outc, inc, kh, kw = w.shape
    B = x.shape[0]
    stride = 2 if downsample else 1

    # NOTE: the conv bias is intentionally not applied: a per-channel constant
    # added before training-mode BatchNorm is exactly cancelled by the batch
    # mean subtraction (only fp rounding differs).
    patches, Hout, Wout = _im2col_km(x, kh, kw, pad=1, stride=stride)

    K = kh * kw * inc
    M = B * Hout * Wout
    K_pad = _round_up(K, 16)      # bf16 sublane packing
    M_pad = _round_up(M, 128)     # lane-dense output
    N_pad = _round_up(outc, 8)

    patches = jnp.pad(patches, ((0, K_pad - K), (0, M_pad - M)))
    w_mat = jnp.transpose(w, (0, 2, 3, 1)).reshape(outc, K)   # (outc, (ki,kj,c))
    w_mat = jnp.pad(w_mat, ((0, N_pad - outc), (0, K_pad - K)))
    g = jnp.pad(gamma, (0, N_pad - outc)).reshape(N_pad, 1).astype(jnp.float32)
    b = jnp.pad(beta, (0, N_pad - outc)).reshape(N_pad, 1).astype(jnp.float32)

    out = _fused_conv_bn_lrelu(
        w_mat.astype(jnp.bfloat16), patches.astype(jnp.bfloat16),
        g, b, M, eps=eps, neg_slope=neg_slope)

    out = out[:outc, :M].reshape(outc, B, Hout, Wout)
    return jnp.transpose(out, (1, 0, 2, 3))           # back to NCHW


# ---------------------------------------------------------------------------
# Pure-JAX reference (mirrors the PyTorch module) for correctness check
# ---------------------------------------------------------------------------
def conv_block_d_reference(x, params, downsample=False, eps=1e-5, neg_slope=0.01):
    w, b = params["conv_w"], params["conv_b"]
    gamma, beta = params["bn_gamma"], params["bn_beta"]
    stride = (2, 2) if downsample else (1, 1)
    y = jax.lax.conv_general_dilated(
        x, w, window_strides=stride, padding=((1, 1), (1, 1)),
        dimension_numbers=("NCHW", "OIHW", "NCHW"))
    y = y + b[None, :, None, None]
    mean = jnp.mean(y, axis=(0, 2, 3), keepdims=True)
    var = jnp.var(y, axis=(0, 2, 3), keepdims=True)   # biased, like BN training
    yn = (y - mean) * jax.lax.rsqrt(var + eps)
    yn = yn * gamma[None, :, None, None] + beta[None, :, None, None]
    return jnp.where(yn >= 0.0, yn, neg_slope * yn)   # LeakyReLU(0.01)


# ---------------------------------------------------------------------------
# Deterministic parameter init (synthetic -- no checkpoint load)
# ---------------------------------------------------------------------------
def init_params(key, inc, outc, downsample=False):
    k1, k2, k3, k4 = jax.random.split(key, 4)
    ksz = 4 if downsample else 3
    fan = inc * ksz * ksz
    bound = 1.0 / np.sqrt(fan)
    return {
        "conv_w": jax.random.uniform(k1, (outc, inc, ksz, ksz),
                                     jnp.float32, -bound, bound),
        "conv_b": jax.random.uniform(k2, (outc,), jnp.float32, -bound, bound),
        "bn_gamma": jax.random.uniform(k3, (outc,), jnp.float32, 0.5, 1.5),
        "bn_beta": jax.random.uniform(k4, (outc,), jnp.float32, -0.5, 0.5),
    }


if __name__ == "__main__":
    key = jax.random.PRNGKey(0)
    kx, kp1, kp2 = jax.random.split(key, 3)
    x = jax.random.normal(kx, (2, 4, 16, 16), jnp.float32)

    fwd = jax.jit(conv_block_d_forward, static_argnames=("downsample",))

    # Standard block: Conv2d(4, 8, k=3, p=1) + BN + LeakyReLU -> (2, 8, 16, 16)
    params = init_params(kp1, 4, 8, downsample=False)
    out = jax.block_until_ready(fwd(x, params, downsample=False))
    ref = conv_block_d_reference(x, params, downsample=False)
    # bf16 MXU operands vs f32 reference -> loose-ish tolerance.
    np.testing.assert_allclose(np.asarray(out), np.asarray(ref),
                               rtol=2e-2, atol=2e-2)

    # Downsample block: Conv2d(4, 8, k=4, s=2, p=1) + BN + LeakyReLU -> (2, 8, 8, 8)
    params_ds = init_params(kp2, 4, 8, downsample=True)
    out_ds = jax.block_until_ready(fwd(x, params_ds, downsample=True))
    ref_ds = conv_block_d_reference(x, params_ds, downsample=True)
    np.testing.assert_allclose(np.asarray(out_ds), np.asarray(ref_ds),
                               rtol=2e-2, atol=2e-2)

    print("KERNEL_OK")
</pallas_src>

<mosaic_0001>
module attributes {stable_mosaic.version = 11 : i64} {
  func.func @_fused_kernel(%arg0: i32, %arg1: i32, %arg2: memref<8x48xbf16, #tpu.memory_space<vmem>>, %arg3: memref<48x512xbf16, #tpu.memory_space<vmem>>, %arg4: memref<8x1xf32, #tpu.memory_space<vmem>>, %arg5: memref<8x1xf32, #tpu.memory_space<vmem>>, %arg6: memref<8x512xf32, #tpu.memory_space<vmem>>, %arg7: memref<8x512xf32, #tpu.memory_space<vmem>>, %arg8: memref<8x1xf32, #tpu.memory_space<vmem>>, %arg9: memref<8x1xf32, #tpu.memory_space<vmem>>, %arg10: memref<8x1xf32, #tpu.memory_space<vmem>>, %arg11: memref<8x1xf32, #tpu.memory_space<vmem>>) attributes {dimension_semantics = [#tpu.dimension_semantics<arbitrary>, #tpu.dimension_semantics<arbitrary>], iteration_bounds = array<i64: 2, 1>, scalar_prefetch = 0 : i64, scratch_operands = 5 : i64, tpu.core_type = #tpu.core_type<tc>, window_params = [{pipeline_mode = #tpu.pipeline_mode<synchronous>, transform_indices = @transform_0, window_bounds = array<i64: 8, 48>}, {transform_indices = @transform_1, window_bounds = array<i64: 48, 512>}, {pipeline_mode = #tpu.pipeline_mode<synchronous>, transform_indices = @transform_2, window_bounds = array<i64: 8, 1>}, {pipeline_mode = #tpu.pipeline_mode<synchronous>, transform_indices = @transform_3, window_bounds = array<i64: 8, 1>}, {transform_indices = @transform_4, window_bounds = array<i64: 8, 512>}]} {
    %c512_i32 = arith.constant 512 : i32
    %0 = arith.muli %arg1, %c512_i32 : i32
    %1 = tpu.assume_multiple %0, 512 : i32
    %c0_i32 = arith.constant 0 : i32
    %2 = arith.cmpi eq, %arg0, %c0_i32 : i32
    %c0_i32_0 = arith.constant 0 : i32
    %3 = arith.cmpi eq, %arg1, %c0_i32_0 : i32
    %4 = arith.andi %2, %3 : i1
    %5 = arith.extui %4 : i1 to i32
    %c0_i32_1 = arith.constant 0 : i32
    %6 = arith.cmpi ne, %5, %c0_i32_1 : i32
    scf.if %6 {
      %cst = arith.constant 0.000000e+00 : f32
      %18 = vector.broadcast %cst : f32 to vector<8x1xf32>
      %c0 = arith.constant 0 : index
      %c0_8 = arith.constant 0 : index
      %19 = vector.load %arg8[%c0, %c0_8] : memref<8x1xf32, #tpu.memory_space<vmem>>, vector<8x1xf32>
      tpu.vector_store %arg8[%c0, %c0_8], %18 {strides = array<i32>} : memref<8x1xf32, #tpu.memory_space<vmem>>, vector<8x1xf32>,
      %cst_9 = arith.constant 0.000000e+00 : f32
      %20 = vector.broadcast %cst_9 : f32 to vector<8x1xf32>
      %c0_10 = arith.constant 0 : index
      %c0_11 = arith.constant 0 : index
      %21 = vector.load %arg9[%c0_10, %c0_11] : memref<8x1xf32, #tpu.memory_space<vmem>>, vector<8x1xf32>
      tpu.vector_store %arg9[%c0_10, %c0_11], %20 {strides = array<i32>} : memref<8x1xf32, #tpu.memory_space<vmem>>, vector<8x1xf32>,
    } else {
    }
    %c0_i32_2 = arith.constant 0 : i32
    %7 = arith.cmpi eq, %arg0, %c0_i32_2 : i32
    %8 = arith.extui %7 : i1 to i32
    %c0_i32_3 = arith.constant 0 : i32
    %9 = arith.cmpi ne, %8, %c0_i32_3 : i32
    scf.if %9 {
      %c0 = arith.constant 0 : index
      %c0_8 = arith.constant 0 : index
      %18 = vector.load %arg2[%c0, %c0_8] : memref<8x48xbf16, #tpu.memory_space<vmem>>, vector<8x48xbf16>
      %c0_9 = arith.constant 0 : index
      %c0_10 = arith.constant 0 : index
      %19 = vector.load %arg3[%c0_9, %c0_10] : memref<48x512xbf16, #tpu.memory_space<vmem>>, vector<48x512xbf16>
      %cst = arith.constant dense<0.000000e+00> : vector<8x512xf32>
      %20 = tpu.matmul %18, %19, %cst {dimension_numbers = #tpu.dot_dimension_numbers<[1], [0], [0], [1], [0, 0, 1, 1], [], []>} : vector<8x48xbf16>, vector<48x512xbf16>, vector<8x512xf32> -> vector<8x512xf32>
      %c0_11 = arith.constant 0 : index
      %21 = arith.index_cast %1 : i32 to index
      %22 = vector.load %arg7[%c0_11, %21] : memref<8x512xf32, #tpu.memory_space<vmem>>, vector<8x512xf32>
      tpu.vector_store %arg7[%c0_11, %21], %20 {strides = array<i32>} : memref<8x512xf32, #tpu.memory_space<vmem>>, vector<8x512xf32>,
      %c0_12 = arith.constant 0 : index
      %c0_13 = arith.constant 0 : index
      %23 = vector.load %arg8[%c0_12, %c0_13] : memref<8x1xf32, #tpu.memory_space<vmem>>, vector<8x1xf32>
      %cst_14 = arith.constant dense<0.000000e+00> : vector<8xf32>
      %24 = vector.multi_reduction <add>, %20, %cst_14 [1] : vector<8x512xf32> to vector<8xf32>
      %25 = vector.shape_cast %24 : vector<8xf32> to vector<8x1xf32>
      %26 = arith.addf %23, %25 : vector<8x1xf32>
      %c0_15 = arith.constant 0 : index
      %c0_16 = arith.constant 0 : index
      %27 = vector.load %arg8[%c0_15, %c0_16] : memref<8x1xf32, #tpu.memory_space<vmem>>, vector<8x1xf32>
      tpu.vector_store %arg8[%c0_15, %c0_16], %26 {strides = array<i32>} : memref<8x1xf32, #tpu.memory_space<vmem>>, vector<8x1xf32>,
      %c0_17 = arith.constant 0 : index
      %c0_18 = arith.constant 0 : index
      %28 = vector.load %arg9[%c0_17, %c0_18] : memref<8x1xf32, #tpu.memory_space<vmem>>, vector<8x1xf32>
      %29 = arith.mulf %20, %20 : vector<8x512xf32>
      %cst_19 = arith.constant dense<0.000000e+00> : vector<8xf32>
      %30 = vector.multi_reduction <add>, %29, %cst_19 [1] : vector<8x512xf32> to vector<8xf32>
      %31 = vector.shape_cast %30 : vector<8xf32> to vector<8x1xf32>
      %32 = arith.addf %28, %31 : vector<8x1xf32>
      %c0_20 = arith.constant 0 : index
      %c0_21 = arith.constant 0 : index
      %33 = vector.load %arg9[%c0_20, %c0_21] : memref<8x1xf32, #tpu.memory_space<vmem>>, vector<8x1xf32>
      tpu.vector_store %arg9[%c0_20, %c0_21], %32 {strides = array<i32>} : memref<8x1xf32, #tpu.memory_space<vmem>>, vector<8x1xf32>,
    } else {
    }
    %c1_i32 = arith.constant 1 : i32
    %10 = arith.cmpi eq, %arg0, %c1_i32 : i32
    %c0_i32_4 = arith.constant 0 : i32
    %11 = arith.cmpi eq, %arg1, %c0_i32_4 : i32
    %12 = arith.andi %10, %11 : i1
    %13 = arith.extui %12 : i1 to i32
    %c0_i32_5 = arith.constant 0 : i32
    %14 = arith.cmpi ne, %13, %c0_i32_5 : i32
    scf.if %14 {
      %c0 = arith.constant 0 : index
      %c0_8 = arith.constant 0 : index
      %18 = vector.load %arg8[%c0, %c0_8] : memref<8x1xf32, #tpu.memory_space<vmem>>, vector<8x1xf32>
      %cst = arith.constant 0.001953125 : f32
      %19 = vector.broadcast %cst : f32 to vector<8x1xf32>
      %20 = arith.mulf %18, %19 : vector<8x1xf32>
      %c0_9 = arith.constant 0 : index
      %c0_10 = arith.constant 0 : index
      %21 = vector.load %arg9[%c0_9, %c0_10] : memref<8x1xf32, #tpu.memory_space<vmem>>, vector<8x1xf32>
      %cst_11 = arith.constant 0.001953125 : f32
      %22 = vector.broadcast %cst_11 : f32 to vector<8x1xf32>
      %23 = arith.mulf %21, %22 : vector<8x1xf32>
      %24 = arith.mulf %20, %20 : vector<8x1xf32>
      %25 = arith.subf %23, %24 : vector<8x1xf32>
      %cst_12 = arith.constant 0.000000e+00 : f32
      %26 = vector.broadcast %cst_12 : f32 to vector<8x1xf32>
      %27 = arith.maximumf %25, %26 : vector<8x1xf32>
      %cst_13 = arith.constant 9.99999974E-6 : f32
      %28 = vector.broadcast %cst_13 : f32 to vector<8x1xf32>
      %29 = arith.addf %27, %28 : vector<8x1xf32>
      %30 = math.rsqrt %29 : vector<8x1xf32>
      %c0_14 = arith.constant 0 : index
      %c0_15 = arith.constant 0 : index
      %31 = vector.load %arg4[%c0_14, %c0_15] : memref<8x1xf32, #tpu.memory_space<vmem>>, vector<8x1xf32>
      %32 = arith.mulf %31, %30 : vector<8x1xf32>
      %c0_16 = arith.constant 0 : index
      %c0_17 = arith.constant 0 : index
      %33 = vector.load %arg10[%c0_16, %c0_17] : memref<8x1xf32, #tpu.memory_space<vmem>>, vector<8x1xf32>
      tpu.vector_store %arg10[%c0_16, %c0_17], %32 {strides = array<i32>} : memref<8x1xf32, #tpu.memory_space<vmem>>, vector<8x1xf32>,
      %c0_18 = arith.constant 0 : index
      %c0_19 = arith.constant 0 : index
      %34 = vector.load %arg5[%c0_18, %c0_19] : memref<8x1xf32, #tpu.memory_space<vmem>>, vector<8x1xf32>
      %35 = arith.mulf %20, %32 : vector<8x1xf32>
      %36 = arith.subf %34, %35 : vector<8x1xf32>
      %c0_20 = arith.constant 0 : index
      %c0_21 = arith.constant 0 : index
      %37 = vector.load %arg11[%c0_20, %c0_21] : memref<8x1xf32, #tpu.memory_space<vmem>>, vector<8x1xf32>
      tpu.vector_store %arg11[%c0_20, %c0_21], %36 {strides = array<i32>} : memref<8x1xf32, #tpu.memory_space<vmem>>, vector<8x1xf32>,
    } else {
    }
    %c1_i32_6 = arith.constant 1 : i32
    %15 = arith.cmpi eq, %arg0, %c1_i32_6 : i32
    %16 = arith.extui %15 : i1 to i32
    %c0_i32_7 = arith.constant 0 : i32
    %17 = arith.cmpi ne, %16, %c0_i32_7 : i32
    scf.if %17 {
      %c0 = arith.constant 0 : index
      %18 = arith.index_cast %1 : i32 to index
      %19 = vector.load %arg7[%c0, %18] : memref<8x512xf32, #tpu.memory_space<vmem>>, vector<8x512xf32>
      %c0_8 = arith.constant 0 : index
      %c0_9 = arith.constant 0 : index
      %20 = vector.load %arg10[%c0_8, %c0_9] : memref<8x1xf32, #tpu.memory_space<vmem>>, vector<8x1xf32>
      %21 = vector.broadcast %20 : vector<8x1xf32> to vector<8x512xf32>
      %22 = arith.mulf %19, %21 : vector<8x512xf32>
      %c0_10 = arith.constant 0 : index
      %c0_11 = arith.constant 0 : index
      %23 = vector.load %arg11[%c0_10, %c0_11] : memref<8x1xf32, #tpu.memory_space<vmem>>, vector<8x1xf32>
      %24 = vector.broadcast %23 : vector<8x1xf32> to vector<8x512xf32>
      %25 = arith.addf %22, %24 : vector<8x512xf32>
      %cst = arith.constant 0.000000e+00 : f32
      %26 = vector.broadcast %cst : f32 to vector<8x512xf32>
      %27 = arith.cmpf oge, %25, %26 : vector<8x512xf32>
      %cst_12 = arith.constant 0.00999999977 : f32
      %28 = vector.broadcast %cst_12 : f32 to vector<8x512xf32>
      %29 = arith.mulf %28, %25 : vector<8x512xf32>
      %30 = arith.select %27, %25, %29 : vector<8x512xi1>, vector<8x512xf32>
      %c0_13 = arith.constant 0 : index
      %c0_14 = arith.constant 0 : index
      %31 = vector.load %arg6[%c0_13, %c0_14] : memref<8x512xf32, #tpu.memory_space<vmem>>, vector<8x512xf32>
      tpu.vector_store %arg6[%c0_13, %c0_14], %30 {strides = array<i32>} : memref<8x512xf32, #tpu.memory_space<vmem>>, vector<8x512xf32>,
    } else {
    }
    return
  }
  func.func @transform_0(%arg0: i32, %arg1: i32) -> (i32, i32) {
    %c0_i32 = arith.constant 0 : i32
    %c0_i32_0 = arith.constant 0 : i32
    %c0_i32_1 = arith.constant 0 : i32
    return %c0_i32, %c0_i32_0 : i32, i32
  }
  func.func @transform_1(%arg0: i32, %arg1: i32) -> (i32, i32) {
    %c1_i32 = arith.constant 1 : i32
    %0 = arith.subi %c1_i32, %arg0 : i32
    %1 = arith.muli %arg1, %0 : i32
    %c0_i32 = arith.constant 0 : i32
    %2 = arith.muli %c0_i32, %arg0 : i32
    %3 = arith.addi %1, %2 : i32
    %c0_i32_0 = arith.constant 0 : i32
    %c0_i32_1 = arith.constant 0 : i32
    return %c0_i32_0, %3 : i32, i32
  }
  func.func @transform_2(%arg0: i32, %arg1: i32) -> (i32, i32) {
    %c0_i32 = arith.constant 0 : i32
    %c0_i32_0 = arith.constant 0 : i32
    %c0_i32_1 = arith.constant 0 : i32
    return %c0_i32, %c0_i32_0 : i32, i32
  }
  func.func @transform_3(%arg0: i32, %arg1: i32) -> (i32, i32) {
    %c0_i32 = arith.constant 0 : i32
    %c0_i32_0 = arith.constant 0 : i32
    %c0_i32_1 = arith.constant 0 : i32
    return %c0_i32, %c0_i32_0 : i32, i32
  }
  func.func @transform_4(%arg0: i32, %arg1: i32) -> (i32, i32) {
    %0 = arith.muli %arg1, %arg0 : i32
    %c0_i32 = arith.constant 0 : i32
    %c0_i32_0 = arith.constant 0 : i32
    return %c0_i32, %0 : i32, i32
  }
}

</mosaic_0001>

<llo_original>
// kernel: conv_block_d_forward.1
$region0: #{conv_block_d_forward.1}
  #allocation0 [shape = 'u32[]', space=smem, size = 0x4, offset = 0x4, fixed_abs, tag = 'smem constant byte address 0x4 - core index']
  #allocation1 [shape = 'u32[144,128]{1,0:T(1,128)}', space=vmem, size = 0x12000, scoped, tag = 'internal scratch']
  #allocation2 [shape = 'f32[8,512]{1,0:T(8,128)}', space=vmem, size = 0x4000, scoped, tag = 'scratch operand']
  #allocation3 [shape = 'f32[8,1]{1,0:T(8,128)}', space=vmem, size = 0x1000, scoped, tag = 'scratch operand']
  #allocation4 [shape = 'f32[8,1]{1,0:T(8,128)}', space=vmem, size = 0x1000, scoped, tag = 'scratch operand']
  #allocation5 [shape = 'f32[8,1]{1,0:T(8,128)}', space=vmem, size = 0x1000, scoped, tag = 'scratch operand']
  #allocation6 [shape = 'f32[8,1]{1,0:T(8,128)}', space=vmem, size = 0x1000, scoped, tag = 'scratch operand']
  %s0 = inlined_call_operand.vmem [shape: bf16[8,48], index: 0, kind: input, shape index: {}]
  %s1 = inlined_call_operand.vmem [shape: bf16[48,512], index: 1, kind: input, shape index: {}]
  %s2 = inlined_call_operand.vmem [shape: f32[8,1], index: 2, kind: input, shape index: {}]
  %s3 = inlined_call_operand.vmem [shape: f32[8,1], index: 3, kind: input, shape index: {}]
  %s4 = inlined_call_operand.vmem [shape: f32[8,512], index: 4, kind: output, shape index: {}]
  %s5 = sld [smem:[#allocation0]]
  $region65: #{conv_block_d_forward.1} parent=0
    _
  %s7 = ssub.s32 1, %s5
  %s8 = scalar_select 0, %s7, %s5
  loop: start=0, step=1, limit=4
  $region2: #{conv_block_d_forward.1} parent=0 // loop_pre_header
    _
  $region3: #{conv_block_d_forward.1} parent=0 // loop_header
    %s10 = sphi 0, %s14
    %p11 = scmp.ge.s32.totalorder %s10, 4
    %s17 = sphi 0, %s29
    %s18 = sphi 0, %s25
    %s19 = sphi 0, %s17
    %s20 = sphi 0, %s18
    %s21 = sphi 0, %s19
    %s22 = sphi 0, %s20
    %s30 = sphi 0, %s30
    %s32 = sphi 0, %s30
    %s33 = sphi 0, %s32
    %s47 = sphi 0, %s33
    %s57 = sphi 0, %s59
    %s60 = sphi 0, %s57
    %s61 = sphi 0, %s60
    %s77 = sphi 0, %s61
    %s81 = sphi 0, %s81
    %s83 = sphi 0, %s81
    %s84 = sphi 0, %s83
    %s98 = sphi 0, %s84
    %s102 = sphi 0, %s102
    %s104 = sphi 0, %s102
    %s105 = sphi 0, %s104
    %s119 = sphi 0, %s105
    %s127 = sphi 0, %s129
    %s130 = sphi 0, %s127
    %s131 = sphi 0, %s130
    %s147 = sphi 0, %s131
  $region4: #{conv_block_d_forward.1} parent=0 // loop_header_branch
    %13 = sbr.rel (%p11) target = $region8
  $region5: #{conv_block_d_forward.1} parent=0 // loop_body
    %s15 = ssub.s32 %s10, 1
    %s16 = ssub.s32 %s10, 2
    %s23 = sadd.s32 1, %s18
    %p24 = scmp.ge.s32.totalorder %s23, 1
    %s25 = scalar_select %p24, 0, %s23
    %s26 = sadd.s32 1, %s17
    %s27 = scalar_select %p24, %s26, %s17
    %p28 = scmp.ge.s32.totalorder %s27, 2
    %s29 = scalar_select %p28, 0, %s27
    %s31 = sadd.s32 %s30, 1
    %p34 = scmp.eq.s32.totalorder %s10, 1
    %p35 = scmp.ne.s32.totalorder %s30, %s32
    %p36 = scmp.eq.s32.totalorder %s10, 0
    %p37 = por %p35, %p36
    %p38 = scmp.ne.s32.totalorder %s30, %s32
    %p39 = scmp.eq.s32.totalorder %s15, 1
    %p40 = por %p38, %p39
    %p41 = scmp.ne.s32.totalorder %s32, %s33
    %p42 = scmp.eq.s32.totalorder %s15, 0
    %p43 = por %p41, %p42
    %p44 = scmp.ne.s32.totalorder %s32, %s33
    %p45 = scmp.eq.s32.totalorder %s16, 1
    %p46 = por %p44, %p45
    %p48 = scmp.ne.s32.totalorder %s33, %s47
    %p49 = scmp.eq.s32.totalorder %s16, 0
    %p50 = por %p48, %p49
    %s51 = ssub.s32 1, %s17
    %s52 = smul.u32 %s18, %s51
    %s53 = ssub.s32 1, %s29
    %s54 = smul.u32 %s25, %s53
    %s55 = ssub.s32 %s52, %s54
    %p56 = scmp.eq.s32.totalorder %s55, 0
    %s58 = sadd.s32 %s57, 1
    %s59 = scalar_select %p56, %s57, %s58
    %p62 = pneg %p56
    %p63 = scmp.eq.s32.totalorder %s10, 1
    %p64 = por %p62, %p63
    %p65 = scmp.ne.s32.totalorder %s57, %s60
    %p66 = scmp.eq.s32.totalorder %s10, 0
    %p67 = por %p65, %p66
    %p68 = scmp.ne.s32.totalorder %s57, %s60
    %p69 = scmp.eq.s32.totalorder %s15, 1
    %p70 = por %p68, %p69
    %p71 = scmp.ne.s32.totalorder %s60, %s61
    %p72 = scmp.eq.s32.totalorder %s15, 0
    %p73 = por %p71, %p72
    %p74 = scmp.ne.s32.totalorder %s60, %s61
    %p75 = scmp.eq.s32.totalorder %s16, 1
    %p76 = por %p74, %p75
    %p78 = scmp.ne.s32.totalorder %s61, %s77
    %p79 = scmp.eq.s32.totalorder %s16, 0
    %p80 = por %p78, %p79
    %s82 = sadd.s32 %s81, 1
    %p85 = scmp.eq.s32.totalorder %s10, 1
    %p86 = scmp.ne.s32.totalorder %s81, %s83
    %p87 = scmp.eq.s32.totalorder %s10, 0
    %p88 = por %p86, %p87
    %p89 = scmp.ne.s32.totalorder %s81, %s83
    %p90 = scmp.eq.s32.totalorder %s15, 1
    %p91 = por %p89, %p90
    %p92 = scmp.ne.s32.totalorder %s83, %s84
    %p93 = scmp.eq.s32.totalorder %s15, 0
    %p94 = por %p92, %p93
    %p95 = scmp.ne.s32.totalorder %s83, %s84
    %p96 = scmp.eq.s32.totalorder %s16, 1
    %p97 = por %p95, %p96
    %p99 = scmp.ne.s32.totalorder %s84, %s98
    %p100 = scmp.eq.s32.totalorder %s16, 0
    %p101 = por %p99, %p100
    %s103 = sadd.s32 %s102, 1
    %p106 = scmp.eq.s32.totalorder %s10, 1
    %p107 = scmp.ne.s32.totalorder %s102, %s104
    %p108 = scmp.eq.s32.totalorder %s10, 0
    %p109 = por %p107, %p108
    %p110 = scmp.ne.s32.totalorder %s102, %s104
    %p111 = scmp.eq.s32.totalorder %s15, 1
    %p112 = por %p110, %p111
    %p113 = scmp.ne.s32.totalorder %s104, %s105
    %p114 = scmp.eq.s32.totalorder %s15, 0
    %p115 = por %p113, %p114
    %p116 = scmp.ne.s32.totalorder %s104, %s105
    %p117 = scmp.eq.s32.totalorder %s16, 1
    %p118 = por %p116, %p117
    %p120 = scmp.ne.s32.totalorder %s105, %s119
    %p121 = scmp.eq.s32.totalorder %s16, 0
    %p122 = por %p120, %p121
    %s123 = smul.u32 %s18, %s17
    %s124 = smul.u32 %s25, %s29
    %s125 = ssub.s32 %s123, %s124
    %p126 = scmp.eq.s32.totalorder %s125, 0
    %s128 = sadd.s32 %s127, 1
    %s129 = scalar_select %p126, %s127, %s128
    %p132 = pneg %p126
    %p133 = scmp.eq.s32.totalorder %s10, 1
    %p134 = por %p132, %p133
    %p135 = scmp.ne.s32.totalorder %s127, %s130
    %p136 = scmp.eq.s32.totalorder %s10, 0
    %p137 = por %p135, %p136
    %p138 = scmp.ne.s32.totalorder %s127, %s130
    %p139 = scmp.eq.s32.totalorder %s15, 1
    %p140 = por %p138, %p139
    %p141 = scmp.ne.s32.totalorder %s130, %s131
    %p142 = scmp.eq.s32.totalorder %s15, 0
    %p143 = por %p141, %p142
    %p144 = scmp.ne.s32.totalorder %s130, %s131
    %p145 = scmp.eq.s32.totalorder %s16, 1
    %p146 = por %p144, %p145
    %p148 = scmp.ne.s32.totalorder %s131, %s147
    %p149 = scmp.eq.s32.totalorder %s16, 0
    %p150 = por %p148, %p149
    %p151 = scmp.le.s32.totalorder 1, %s10
    %p152 = scmp.lt.s32.totalorder %s10, 3
    %p153 = pnand %p151, %p152
    %p154 = pneg %p153
    // Predicated region
    $region9: #{conv_block_d_forward.1} parent=5 // pred_check
      _
    $region10: #{conv_block_d_forward.1} parent=5 // pred_check_branch
      %156 = sbr.rel (%p153) target = $region12
    $region11: #{conv_block_d_forward.1} parent=5 // pred_region
      %s157 = ssub.s32 %s10, 1
      // Predicated region
      $region13: #{conv_block_d_forward.1} parent=11 // pred_check
        %p158 = pneg %p43
      $region14: #{conv_block_d_forward.1} parent=11 // pred_check_branch
        %160 = sbr.rel (%p158) target = $region16
      $region15: #{conv_block_d_forward.1} parent=11 // pred_region
        _
      $region16: #{conv_block_d_forward.1} parent=11 // pred_fallthru
        _
      // Predicated region
      $region17: #{conv_block_d_forward.1} parent=11 // pred_check
        %p161 = pneg %p94
      $region18: #{conv_block_d_forward.1} parent=11 // pred_check_branch
        %163 = sbr.rel (%p161) target = $region20
      $region19: #{conv_block_d_forward.1} parent=11 // pred_region
        _
      $region20: #{conv_block_d_forward.1} parent=11 // pred_fallthru
        _
      // Predicated region
      $region21: #{conv_block_d_forward.1} parent=11 // pred_check
        %p164 = pneg %p115
      $region22: #{conv_block_d_forward.1} parent=11 // pred_check_branch
        %166 = sbr.rel (%p164) target = $region24
      $region23: #{conv_block_d_forward.1} parent=11 // pred_region
        _
      $region24: #{conv_block_d_forward.1} parent=11 // pred_fallthru
        _
    $region12: #{conv_block_d_forward.1} parent=5 // pred_fallthru
      _
    %p167 = scmp.lt.s32.totalorder %s10, 2
    // Predicated region
    $region25: #{conv_block_d_forward.1} parent=5 // pred_check
      %p168 = pneg %p167
    $region26: #{conv_block_d_forward.1} parent=5 // pred_check_branch
      %170 = sbr.rel (%p168) target = $region28
    $region27: #{conv_block_d_forward.1} parent=5 // pred_region
      // Predicated region
      $region29: #{conv_block_d_forward.1} parent=27 // pred_check
        %p171 = pneg %p67
      $region30: #{conv_block_d_forward.1} parent=27 // pred_check_branch
        %173 = sbr.rel (%p171) target = $region32
      $region31: #{conv_block_d_forward.1} parent=27 // pred_region
        %s174 = ssub.s32 1, %s17
        %s175 = smul.u32 %s18, %s174
        %s176 = smul.u32 4, %s175
        %p177 = scmp.lt.s32.totalorder %s176, 3
        %s178 = scalar_select %p177, %s176, 3
        %s179 = smul.addr %s178, 4
        %s180 = scalar_lea.vmem %s1, %s179
        %s181 = ssub.s32 1, %s17
        %s182 = smul.u32 %s18, %s181
        %s183 = smul.u32 4, %s182
      $region32: #{conv_block_d_forward.1} parent=27 // pred_fallthru
        _
    $region28: #{conv_block_d_forward.1} parent=5 // pred_fallthru
      _
    %p184 = scmp.le.s32.totalorder 1, %s10
    %p185 = scmp.lt.s32.totalorder %s10, 3
    %p186 = pnand %p184, %p185
    %p187 = pneg %p186
    // Predicated region
    $region33: #{conv_block_d_forward.1} parent=5 // pred_check
      _
    $region34: #{conv_block_d_forward.1} parent=5 // pred_check_branch
      %189 = sbr.rel (%p186) target = $region36
    $region35: #{conv_block_d_forward.1} parent=5 // pred_region
      %s190 = ssub.s32 %s10, 1
      %p191 = pneg %p43
      %p192 = pneg %p40
      %s193 = ssub.s32 1, %s19
      %s194 = smul.u32 %s20, %s193
      %s195 = smul.u32 4, %s194
      %p196 = scmp.lt.s32.totalorder %s195, 3
      %s197 = scalar_select %p196, %s195, 3
      %s198 = smul.addr %s197, 4
      %s199 = scalar_lea.vmem %s1, %s198
      %p200 = pneg %p73
      %p201 = pneg %p70
      %p202 = pneg %p94
      %p203 = pneg %p91
      %p204 = pneg %p115
      %p205 = pneg %p112
      %p206 = pneg %p143
      %p207 = pneg %p140
      %s208 = smul.u32 %s20, %s19
      %s209 = smul.u32 4, %s208
      %p210 = scmp.lt.s32.totalorder %s209, 3
      %s211 = scalar_select %p210, %s209, 3
      %s212 = smul.addr %s211, 8
      %s213 = scalar_lea.vmem %s4, %s212
      %s214 = ssub.s32 1, %s19
      %s215 = smul.u32 %s20, %s214
      %s216 = smul.u32 4, %s215
      %p217 = scmp.lt.s32.totalorder %s216, 3
      %s218 = scalar_select %p217, %s216, 3
      %s219 = smul.addr %s218, 4
      %s220 = scalar_lea.vmem %s1, %s219
      %s221 = ssub.s32 1, %s19
      %s222 = smul.u32 %s20, %s221
      %s223 = smul.u32 4, %s222
      %s224 = smul.u32 %s20, %s19
      %s225 = smul.u32 4, %s224
      %p226 = scmp.lt.s32.totalorder %s225, 3
      %s227 = scalar_select %p226, %s225, 3
      %s228 = smul.addr %s227, 8
      %s229 = scalar_lea.vmem %s4, %s228
      %s230 = smul.u32 %s20, %s19
      %s231 = smul.u32 4, %s230
      %s233 = smul.u32 %s20, 512
      %p234 = scmp.eq.s32.totalorder %s19, 0
      %p235 = scmp.eq.s32.totalorder %s20, 0
      %p236 = pnand %p234, %p235
      %p237 = pneg %p236
      // Predicated region
      $region37: #{conv_block_d_forward.1} parent=35 // pred_check
        _
      $region38: #{conv_block_d_forward.1} parent=35 // pred_check_branch
        %239 = sbr.rel (%p236) target = $region40
      $region39: #{conv_block_d_forward.1} parent=35 // pred_region
        %vm240 = vcmask 7168
        %241 = vst.msk [vmem:[#allocation3] sm:$0xff] %vm240, 0.0
        %242 = vst.msk [vmem:[#allocation4] sm:$0xff] %vm240, 0.0
      $region40: #{conv_block_d_forward.1} parent=35 // pred_fallthru
        _
      // Predicated region
      $region41: #{conv_block_d_forward.1} parent=35 // pred_check
        %p243 = pneg %p234
      $region42: #{conv_block_d_forward.1} parent=35 // pred_check_branch
        %245 = sbr.rel (%p243) target = $region44
      $region43: #{conv_block_d_forward.1} parent=35 // pred_region
        %v246 = vld [vmem:[%s0] sm:$0xf]
        %v247 = vld [vmem:[%s220] sm:$0xff]
        %v248 = vld [vmem:[%s220 + $0x8] sm:$0xff]
        %v249 = vld [vmem:[%s220 + $0x10] sm:$0xff]
        %v250 = vld [vmem:[%s220 + $0x18] sm:$0xff]
        %v251 = vld [vmem:[%s220 + $0x20] sm:$0xff]
        %v252 = vld [vmem:[%s220 + $0x28] sm:$0xff]
        %v253 = vld [vmem:[%s220 + $0x30] sm:$0xff]
        %v254 = vld [vmem:[%s220 + $0x38] sm:$0xff]
        %v255 = vld [vmem:[%s220 + $0x40] sm:$0xff]
        %v256 = vld [vmem:[%s220 + $0x48] sm:$0xff]
        %v257 = vld [vmem:[%s220 + $0x50] sm:$0xff]
        %v258 = vld [vmem:[%s220 + $0x58] sm:$0xff]
        %v271 = vunpack.c.l.b16 %v247
        %v272 = vunpack.c.h.b16 %v247
        %v273 = vunpack.c.l.b16 %v248
        %v274 = vunpack.c.h.b16 %v248
        %v275 = vunpack.c.l.b16 %v249
        %v276 = vunpack.c.h.b16 %v249
        %v277 = vunpack.c.l.b16 %v250
        %v278 = vunpack.c.h.b16 %v250
        %v279 = vunpack.c.l.b16 %v251
        %v280 = vunpack.c.h.b16 %v251
        %v281 = vunpack.c.l.b16 %v252
        %v282 = vunpack.c.h.b16 %v252
        %v283 = vunpack.c.l.b16 %v253
        %v284 = vunpack.c.h.b16 %v253
        %v285 = vunpack.c.l.b16 %v254
        %v286 = vunpack.c.h.b16 %v254
        %v287 = vunpack.c.l.b16 %v255
        %v288 = vunpack.c.h.b16 %v255
        %v289 = vunpack.c.l.b16 %v256
        %v290 = vunpack.c.h.b16 %v256
        %v291 = vunpack.c.l.b16 %v257
        %v292 = vunpack.c.h.b16 %v257
        %v293 = vunpack.c.l.b16 %v258
        %v294 = vunpack.c.h.b16 %v258
        %v295 = vpack.c.b16 %v275, %v271
        %v296 = vpack.c.b16 %v276, %v272
        %v297 = vpack.c.b16 %v277, %v273
        %v298 = vpack.c.b16 %v278, %v274
        %v299 = vpack.c.b16 %v283, %v279
        %v300 = vpack.c.b16 %v284, %v280
        %v301 = vpack.c.b16 %v285, %v281
        %v302 = vpack.c.b16 %v286, %v282
        %v303 = vpack.c.b16 %v291, %v287
        %v304 = vpack.c.b16 %v292, %v288
        %v305 = vpack.c.b16 %v293, %v289
        %v306 = vpack.c.b16 %v294, %v290
        %vm319 = vcmask 392192
        %v321 = vsel %vm319, %v246, 0
        %323 = vmatprep.subr.bf16.mxu0 %v296
        %324 = vmatpush1.bf16.msra.mxu0 %v295
        %325 = vmatprep.subr.bf16.mxu0 %v300
        %326 = vmatpush1.bf16.msra.mxu0 %v299
        %327 = vmatprep.subr.bf16.mxu0 %v304
        %328 = vmatpush1.bf16.msra.mxu0 %v303
        %329 = vmatprep.subr.bf16.mxu0 0
        %330 = vmatpush1.bf16.msra.mxu0 0
        %331 = vmatprep.subr.bf16.mxu0 0
        %332 = vmatpush1.bf16.msra.mxu0 0
        %333 = vmatprep.subr.bf16.mxu0 0
        %334 = vmatpush1.bf16.msra.mxu0 0
        %335 = vmatprep.subr.bf16.mxu0 0
        %336 = vmatpush1.bf16.msra.mxu0 0
        %337 = vmatprep.subr.bf16.mxu0 0
        %338 = vmatpush1.bf16.msra.mxu0 0
        %339 = vmatprep.subr.bf16.mxu0 0
        %340 = vmatpush1.bf16.msra.mxu0 0
        %341 = vmatprep.subr.bf16.mxu0 0
        %342 = vmatpush1.bf16.msra.mxu0 0
        %343 = vmatprep.subr.bf16.mxu0 0
        %344 = vmatpush1.bf16.msra.mxu0 0
        %345 = vmatprep.subr.bf16.mxu0 0
        %346 = vmatpush1.bf16.msra.mxu0 0
        %347 = vmatprep.subr.bf16.mxu0 0
        %348 = vmatpush1.bf16.msra.mxu0 0
        %349 = vmatprep.subr.bf16.mxu0 0
        %350 = vmatpush1.bf16.msra.mxu0 0
        %351 = vmatprep.subr.bf16.mxu0 0
        %352 = vmatpush1.bf16.msra.mxu0 0
        %353 = vmatprep.subr.bf16.mxu0 0
        %354 = vmatpush1.bf16.msra.mxu0 0
        %355 = vmatprep.mubr.bf16.mxu0 0
        %356 = vmatmul.mubr.bf16.gmra.mrb[0].mxu0 %v321
        %v357 = vpop.f32.mrb[0].mxu0
        %v358 = vadd.f32 0.0, %v357
        %v359 = vpop.f32.mrb[0].mxu0
        %v360 = vadd.f32 0.0, %v359
        %v361 = vpop.f32.mrb[0].mxu0
        %v362 = vpop.f32.mrb[0].mxu0
        %363 = vdwg.mxu0
        %364 = vmatprep.subr.bf16.mxu0 %v298
        %365 = vmatpush1.bf16.msra.mxu0 %v297
        %366 = vmatprep.subr.bf16.mxu0 %v302
        %367 = vmatpush1.bf16.msra.mxu0 %v301
        %368 = vmatprep.subr.bf16.mxu0 %v306
        %369 = vmatpush1.bf16.msra.mxu0 %v305
        %370 = vmatprep.subr.bf16.mxu0 0
        %371 = vmatpush1.bf16.msra.mxu0 0
        %372 = vmatprep.subr.bf16.mxu0 0
        %373 = vmatpush1.bf16.msra.mxu0 0
        %374 = vmatprep.subr.bf16.mxu0 0
        %375 = vmatpush1.bf16.msra.mxu0 0
        %376 = vmatprep.subr.bf16.mxu0 0
        %377 = vmatpush1.bf16.msra.mxu0 0
        %378 = vmatprep.subr.bf16.mxu0 0
        %379 = vmatpush1.bf16.msra.mxu0 0
        %380 = vmatprep.subr.bf16.mxu0 0
        %381 = vmatpush1.bf16.msra.mxu0 0
        %382 = vmatprep.subr.bf16.mxu0 0
        %383 = vmatpush1.bf16.msra.mxu0 0
        %384 = vmatprep.subr.bf16.mxu0 0
        %385 = vmatpush1.bf16.msra.mxu0 0
        %386 = vmatprep.subr.bf16.mxu0 0
        %387 = vmatpush1.bf16.msra.mxu0 0
        %388 = vmatprep.subr.bf16.mxu0 0
        %389 = vmatpush1.bf16.msra.mxu0 0
        %390 = vmatprep.subr.bf16.mxu0 0
        %391 = vmatpush1.bf16.msra.mxu0 0
        %392 = vmatprep.subr.bf16.mxu0 0
        %393 = vmatpush1.bf16.msra.mxu0 0
        %394 = vmatprep.subr.bf16.mxu0 0
        %395 = vmatpush1.bf16.msra.mxu0 0
        %396 = vmatprep.mubr.bf16.mxu0 0
        %397 = vmatmul.mubr.bf16.gmra.mrb[0].mxu0 %v321
        %v398 = vpop.f32.mrb[0].mxu0
        %v399 = vadd.f32 0.0, %v398
        %v400 = vpop.f32.mrb[0].mxu0
        %v401 = vadd.f32 0.0, %v400
        %v402 = vpop.f32.mrb[0].mxu0
        %v403 = vpop.f32.mrb[0].mxu0
        %404 = vdwg.mxu0
        %s405 = sshra.s32 %s233, 7
        %s406 = sand.u32 %s233, 127
        %s407 = smul.addr %s405, 8
        %s408 = scalar_lea.vmem [#allocation2], %s407
        %409 = vst [vmem:[%s408] sm:$0xff] %v358
        %410 = vst [vmem:[%s408 + $0x8] sm:$0xff] %v360
        %411 = vst [vmem:[%s408 + $0x10] sm:$0xff] %v399
        %412 = vst [vmem:[%s408 + $0x18] sm:$0xff] %v401
        %v413 = vld [vmem:[#allocation3] sm:$0xff]
        %v414 = vadd.f32 %v358, %v360
        %v415 = vadd.f32 %v414, %v399
        %v416 = vadd.f32 %v415, %v401
        %417 = vadd.xlane.f32.xlu0 %v416
        %v418 = vpop.xlane.xlu0 %417
        %v419 = vadd.f32 %v413, %v418
        %vm420 = vcmask 7168
        %421 = vst.msk [vmem:[#allocation3] sm:$0xff] %vm420, %v419
        %v422 = vld [vmem:[#allocation4] sm:$0xff]
        %v423 = vmul.f32 %v358, %v358
        %v424 = vmul.f32 %v360, %v360
        %v425 = vmul.f32 %v399, %v399
        %v426 = vmul.f32 %v401, %v401
        %v427 = vadd.f32 %v423, %v424
        %v428 = vadd.f32 %v427, %v425
        %v429 = vadd.f32 %v428, %v426
        %430 = vadd.xlane.f32.xlu0 %v429
        %v431 = vpop.xlane.xlu0 %430
        %v432 = vadd.f32 %v422, %v431
        %433 = vst.msk [vmem:[#allocation4] sm:$0xff] %vm420, %v432
      $region44: #{conv_block_d_forward.1} parent=35 // pred_fallthru
        _
      %p434 = scmp.eq.s32.totalorder %s19, 1
      %p435 = pnand %p434, %p235
      %p436 = pneg %p435
      // Predicated region
      $region45: #{conv_block_d_forward.1} parent=35 // pred_check
        _
      $region46: #{conv_block_d_forward.1} parent=35 // pred_check_branch
        %438 = sbr.rel (%p435) target = $region48
      $region47: #{conv_block_d_forward.1} parent=35 // pred_region
        %v439 = vld [vmem:[#allocation3] sm:$0xff]
        %v440 = vmul.f32 %v439, 0.001953125
        %v441 = vld [vmem:[#allocation4] sm:$0xff]
        %v442 = vmul.f32 %v441, 0.001953125
        %v443 = vmul.f32 %v440, %v440
        %v444 = vsub.f32 %v442, %v443
        %v445 = vmax.f32 %v444, 0.0
        %v446 = vadd.f32 %v445, 1e-05
        %v447 = vrsqrt.pop %v446
        %v448 = vld [vmem:[%s2] sm:$0xff]
        %v449 = vmul.f32 %v448, %v447
        %vm450 = vcmask 7168
        %451 = vst.msk [vmem:[#allocation5] sm:$0xff] %vm450, %v449
        %v452 = vld [vmem:[%s3] sm:$0xff]
        %v453 = vmul.f32 %v440, %v449
        %v454 = vsub.f32 %v452, %v453
        %455 = vst.msk [vmem:[#allocation6] sm:$0xff] %vm450, %v454
      $region48: #{conv_block_d_forward.1} parent=35 // pred_fallthru
        _
      // Predicated region
      $region49: #{conv_block_d_forward.1} parent=35 // pred_check
        %p456 = pneg %p434
      $region50: #{conv_block_d_forward.1} parent=35 // pred_check_branch
        %458 = sbr.rel (%p456) target = $region52
      $region51: #{conv_block_d_forward.1} parent=35 // pred_region
        %s459 = sshra.s32 %s233, 7
        %s460 = sand.u32 %s233, 127
        %s461 = smul.addr %s459, 8
        %s462 = scalar_lea.vmem [#allocation2], %s461
        %v463 = vld [vmem:[%s462] sm:$0xff]
        %v464 = vld [vmem:[%s462 + $0x8] sm:$0xff]
        %v465 = vld [vmem:[%s462 + $0x10] sm:$0xff]
        %v466 = vld [vmem:[%s462 + $0x18] sm:$0xff]
        %v467 = vld [vmem:[#allocation5] sm:$0xff]
        %469 = vset.pattern.permute.xlu0 0
        %470 = vperm.xlu0 %469, %v467
        %v471 = vpop.permute.xlu0 %470
        %v473 = vmul.f32 %v463, %v471
        %v474 = vmul.f32 %v464, %v471
        %v475 = vmul.f32 %v465, %v471
        %v476 = vmul.f32 %v466, %v471
        %v477 = vld [vmem:[#allocation6] sm:$0xff]
        %479 = vset.pattern.permute.xlu0 0
        %480 = vperm.xlu0 %479, %v477
        %v481 = vpop.permute.xlu0 %480
        %v483 = vadd.f32 %v473, %v481
        %v484 = vadd.f32 %v474, %v481
        %v485 = vadd.f32 %v475, %v481
        %v486 = vadd.f32 %v476, %v481
        %vm487 = vcmp.ge.f32.partialorder %v483, 0.0
        %vm488 = vcmp.ge.f32.partialorder %v484, 0.0
        %vm489 = vcmp.ge.f32.partialorder %v485, 0.0
        %vm490 = vcmp.ge.f32.partialorder %v486, 0.0
        %v491 = vmul.f32 %v483, 0.01
        %v492 = vmul.f32 %v484, 0.01
        %v493 = vmul.f32 %v485, 0.01
        %v494 = vmul.f32 %v486, 0.01
        %v495 = vsel %vm487, %v483, %v491
        %v496 = vsel %vm488, %v484, %v492
        %v497 = vsel %vm489, %v485, %v493
        %v498 = vsel %vm490, %v486, %v494
        %499 = vst [vmem:[%s229] sm:$0xff] %v495
        %500 = vst [vmem:[%s229 + $0x8] sm:$0xff] %v496
        %501 = vst [vmem:[%s229 + $0x10] sm:$0xff] %v497
        %502 = vst [vmem:[%s229 + $0x18] sm:$0xff] %v498
      $region52: #{conv_block_d_forward.1} parent=35 // pred_fallthru
        _
      %s503 = smul.u32 %s20, %s19
      %s504 = smul.u32 4, %s503
      %p505 = scmp.lt.s32.totalorder %s504, 3
      %s506 = scalar_select %p505, %s504, 3
      %s507 = smul.addr %s506, 8
      %s508 = scalar_lea.vmem %s4, %s507
      // Predicated region
      $region53: #{conv_block_d_forward.1} parent=35 // pred_check
        %p509 = pneg %p140
      $region54: #{conv_block_d_forward.1} parent=35 // pred_check_branch
        %511 = sbr.rel (%p509) target = $region56
      $region55: #{conv_block_d_forward.1} parent=35 // pred_region
        %s512 = smul.u32 %s20, %s19
        %s513 = smul.u32 4, %s512
      $region56: #{conv_block_d_forward.1} parent=35 // pred_fallthru
        _
    $region36: #{conv_block_d_forward.1} parent=5 // pred_fallthru
      _
    %p514 = scmp.le.s32.totalorder 2, %s10
    // Predicated region
    $region57: #{conv_block_d_forward.1} parent=5 // pred_check
      %p515 = pneg %p514
    $region58: #{conv_block_d_forward.1} parent=5 // pred_check_branch
      %517 = sbr.rel (%p515) target = $region60
    $region59: #{conv_block_d_forward.1} parent=5 // pred_region
      %s518 = ssub.s32 %s10, 2
      // Predicated region
      $region61: #{conv_block_d_forward.1} parent=59 // pred_check
        %p519 = pneg %p146
      $region62: #{conv_block_d_forward.1} parent=59 // pred_check_branch
        %521 = sbr.rel (%p519) target = $region64
      $region63: #{conv_block_d_forward.1} parent=59 // pred_region
        %s522 = smul.u32 %s22, %s21
        %s523 = smul.u32 4, %s522
        %p524 = scmp.lt.s32.totalorder %s523, 3
        %s525 = scalar_select %p524, %s523, 3
        %s526 = smul.addr %s525, 8
        %s527 = scalar_lea.vmem %s4, %s526
      $region64: #{conv_block_d_forward.1} parent=59 // pred_fallthru
        _
    $region60: #{conv_block_d_forward.1} parent=5 // pred_fallthru
      _
  $region6: #{conv_block_d_forward.1} parent=0 // loop_footer
    %s14 = sadd.s32 1, %s10
  $region7: #{conv_block_d_forward.1} parent=0 // loop_footer_branch
    %9 = sbr.rel target = $region3
  $region8: #{conv_block_d_forward.1} parent=0 // loop_exit
    _

</llo_original>
